<compile_context>
chip_gen: v5e
topology: v5e:2x2
jax: 0.10.0
libtpu: 0.0.40
codegen_flags: <defaults>
</compile_context>

<pallas_src>
import math
from functools import partial

import jax
import jax.numpy as jnp
from jax.experimental import pallas as pl
from jax.experimental.pallas import tpu as pltpu


# ----------------------------- kernel body ----------------------------------


def _adain_kernel(gb_ref, x_ref, o_ref, *, eps, inv_n, reduce_axis,
                  centered_variance, bf16_elementwise):
    """Normalize one tile of instances.

    reduce_axis == 1: gb_ref (TR, 2) f32, x_ref/o_ref (TR, HW)  (row layout)
    reduce_axis == 0: gb_ref (2, TC) f32, x_ref/o_ref (HW, TC)  (lane-dense layout)
    """
    # Pass 1: per-instance stats in f32.  The cast fuses into the reductions,
    # so no full-tile f32 temporary is kept live for the output pass.
    xf = x_ref[...].astype(jnp.float32)
    mean = jnp.sum(xf, axis=reduce_axis, keepdims=True) * inv_n
    if centered_variance:
        c = xf - mean
        var = jnp.sum(c * c, axis=reduce_axis, keepdims=True) * inv_n
    else:
        ex2 = jnp.sum(xf * xf, axis=reduce_axis, keepdims=True) * inv_n
        var = jnp.maximum(ex2 - mean * mean, 0.0)

    if reduce_axis == 1:
        gamma, beta = gb_ref[:, 0:1], gb_ref[:, 1:2]
    else:
        gamma, beta = gb_ref[0:1, :], gb_ref[1:2, :]

    s = gamma * jax.lax.rsqrt(var + eps)     # per-instance scale
    t = beta - mean * s                      # per-instance shift

    # Pass 2: o = x*s + t, re-reading x in its I/O dtype (no held f32 tile).
    if bf16_elementwise and o_ref.dtype == jnp.bfloat16:
        o_ref[...] = (x_ref[...] * s.astype(jnp.bfloat16)
                      + t.astype(jnp.bfloat16)).astype(o_ref.dtype)
    else:
        o_ref[...] = (x_ref[...].astype(jnp.float32) * s + t).astype(o_ref.dtype)


# ----------------------------- tiling helpers -------------------------------


def _round_up(x, m):
    return ((x + m - 1) // m) * m


def _vmem_budget_and_limit():
    """VMEM budget for live blocks and the compiler vmem limit, per chip gen."""
    try:
        cap = int(pltpu.get_tpu_info().vmem_capacity_bytes)
    except Exception:
        cap = 64 * 1024 * 1024  # conservative fallback (v7x per-TensorCore VMEM)
    budget = min(int(cap * 0.6), 96 * 1024 * 1024)
    limit = min(cap, budget + 16 * 1024 * 1024)
    return budget, limit


def _pick_row_tile(rows8, hw, itemsize, budget):
    """Row tile (multiple of 8) for the (rows, HW) layout."""
    # Live bytes per tile row: double-buffered input + output blocks, plus one
    # f32 row of headroom for in-kernel intermediates and the tiny gb block.
    per_row = 4 * hw * itemsize + 4 * hw + 32
    tr = max(8, (budget // max(per_row, 1)) // 8 * 8)
    # Cap so the grid has >=4 steps when possible (pipelining + v7x megacore).
    target = _round_up(max(1, -(-rows8 // 4)), 8)
    tr = min(tr, target, rows8)
    return max(8, (tr // 8) * 8)


def _pick_col_tile(rows, hw, itemsize, budget):
    """Column tile (multiple of 128) for the transposed (HW, rows) layout."""
    per_col = 4 * hw * itemsize + 4 * hw + 32
    tc = max(128, (budget // max(per_col, 1)) // 128 * 128)
    target = _round_up(max(1, -(-rows // 4)), 128)
    return min(tc, max(128, target))


# ----------------------------- public wrapper -------------------------------


def adaptive_instance_norm(x, style, weight, bias, *, eps=1e-5,
                           centered_variance=False, bf16_elementwise=True,
                           vmem_budget_bytes=None):
    """
    x:      (B, C, H, W)  f32 or bf16 (NCHW, PyTorch layout)
    style:  (B, S)
    weight: (2C, S)       nn.Linear weight (out x in)
    bias:   (2C,)
    centered_variance: use the numerically safer centered variance pass.
    bf16_elementwise:  run the output pass in bf16 when I/O is bf16
                       (set False on v5e, which has no bf16 VALU).
    """
    B, C, H, W = x.shape
    S = style.shape[1]
    HW = H * W
    rows = B * C
    lr_scale = math.sqrt(2.0 / S)   # EqualLR: fan_in = in_dim for Linear

    # --- EqualLinear hoisted out of the kernel (one small XLA matmul) ---
    gb = (style.astype(jnp.float32) @ weight.astype(jnp.float32).T) * lr_scale \
        + bias.astype(jnp.float32)                                  # (B, 2C)
    gamma = gb[:, :C].reshape(rows)                                 # (B*C,)
    beta = gb[:, C:].reshape(rows)                                  # (B*C,)

    itemsize = jnp.dtype(x.dtype).itemsize
    if vmem_budget_bytes is None:
        budget, vmem_limit = _vmem_budget_and_limit()
    else:
        budget = int(vmem_budget_bytes)
        vmem_limit = budget + 16 * 1024 * 1024

    x2 = x.reshape(rows, HW)
    common = dict(eps=eps, inv_n=1.0 / HW,
                  centered_variance=centered_variance,
                  bf16_elementwise=bf16_elementwise)
    cparams = pltpu.CompilerParams(dimension_semantics=("parallel",),
                                   vmem_limit_bytes=vmem_limit)

    if HW >= 128:
        # Row layout: one instance per sublane row, pixels on the lane axis.
        rows8 = _round_up(rows, 8)
        tr = _pick_row_tile(rows8, HW, itemsize, budget)
        n_steps = -(-rows8 // tr)
        rows_p = n_steps * tr
        gb2 = jnp.stack([gamma, beta], axis=-1)                     # (rows, 2)
        if rows_p != rows:
            x2 = jnp.pad(x2, ((0, rows_p - rows), (0, 0)))
            gb2 = jnp.pad(gb2, ((0, rows_p - rows), (0, 0)))

        out2 = pl.pallas_call(
            partial(_adain_kernel, reduce_axis=1, **common),
            out_shape=jax.ShapeDtypeStruct((rows_p, HW), x.dtype),
            grid_spec=pltpu.PrefetchScalarGridSpec(
                num_scalar_prefetch=0,
                grid=(n_steps,),
                in_specs=[
                    pl.BlockSpec((tr, 2), lambda i: (i, 0)),    # fused gamma/beta
                    pl.BlockSpec((tr, HW), lambda i: (i, 0)),   # x row tile
                ],
                out_specs=pl.BlockSpec((tr, HW), lambda i: (i, 0)),
            ),
            compiler_params=cparams,
        )(gb2, x2)
        if rows_p != rows:
            out2 = out2[:rows]
        return out2.reshape(B, C, H, W)

    # Small feature maps (HW < 128): transposed layout (HW, B*C) so instances
    # sit on the lane axis -> lane-dense, unmasked output stores.  Wrapper
    # transposes are cheap at these sizes.
    tc = _pick_col_tile(rows, HW, itemsize, budget)
    n_steps = -(-rows // tc)
    rows_p = n_steps * tc
    x2t = x2.T                                                      # (HW, rows)
    gbt = jnp.stack([gamma, beta], axis=0)                          # (2, rows)
    if rows_p != rows:
        x2t = jnp.pad(x2t, ((0, 0), (0, rows_p - rows)))
        gbt = jnp.pad(gbt, ((0, 0), (0, rows_p - rows)))

    out2t = pl.pallas_call(
        partial(_adain_kernel, reduce_axis=0, **common),
        out_shape=jax.ShapeDtypeStruct((HW, rows_p), x.dtype),
        grid_spec=pltpu.PrefetchScalarGridSpec(
            num_scalar_prefetch=0,
            grid=(n_steps,),
            in_specs=[
                pl.BlockSpec((2, tc), lambda j: (0, j)),            # fused gamma/beta
                pl.BlockSpec((HW, tc), lambda j: (0, j)),           # x column tile
            ],
            out_specs=pl.BlockSpec((HW, tc), lambda j: (0, j)),
        ),
        compiler_params=cparams,
    )(gbt, x2t)
    out2 = out2t[:, :rows].T if rows_p != rows else out2t.T
    return out2.reshape(B, C, H, W)


# ----------------------------- reference & test ------------------------------


def _reference(x, style, weight, bias, eps=1e-5):
    B, C, H, W = x.shape
    S = style.shape[1]
    scale = math.sqrt(2.0 / S)
    x = x.astype(jnp.float32)
    gb = style.astype(jnp.float32) @ weight.astype(jnp.float32).T * scale \
        + bias.astype(jnp.float32)
    gamma = gb[:, :C][:, :, None, None]
    beta = gb[:, C:][:, :, None, None]
    mean = jnp.mean(x, axis=(2, 3), keepdims=True)
    var = jnp.mean((x - mean) ** 2, axis=(2, 3), keepdims=True)
    normed = (x - mean) / jnp.sqrt(var + eps)
    return gamma * normed + beta


if __name__ == "__main__":
    key = jax.random.PRNGKey(0)
    kx, ks, kw, kx2 = jax.random.split(key, 4)
    STYLE_DIM = 32

    # --- case 1: 16x16 feature map (HW=256, lane-dense row path), f32 ---
    B, C, H, W = 2, 4, 16, 16
    x = jax.random.normal(kx, (B, C, H, W), dtype=jnp.float32)
    style = jax.random.normal(ks, (B, STYLE_DIM), dtype=jnp.float32)
    weight = jax.random.normal(kw, (2 * C, STYLE_DIM), dtype=jnp.float32)
    bias = jnp.concatenate([jnp.ones((C,), jnp.float32),
                            jnp.zeros((C,), jnp.float32)])

    out = jax.block_until_ready(adaptive_instance_norm(x, style, weight, bias))
    ref = _reference(x, style, weight, bias)
    assert out.shape == (B, C, H, W)
    err = float(jnp.max(jnp.abs(out - ref)))
    assert err < 1e-3, f"f32 row-path max abs err {err}"

    # centered-variance ("safe" stats) path
    out_c = jax.block_until_ready(
        adaptive_instance_norm(x, style, weight, bias, centered_variance=True))
    err = float(jnp.max(jnp.abs(out_c - ref)))
    assert err < 1e-3, f"centered-variance path max abs err {err}"

    # --- case 2: bf16 feature map (half HBM traffic, bf16 second pass) ---
    x_bf = x.astype(jnp.bfloat16)
    out_bf = jax.block_until_ready(
        adaptive_instance_norm(x_bf, style, weight, bias))
    ref_bf = _reference(x_bf.astype(jnp.float32), style, weight, bias)
    assert out_bf.dtype == jnp.bfloat16 and out_bf.shape == (B, C, H, W)
    err = float(jnp.max(jnp.abs(out_bf.astype(jnp.float32) - ref_bf)))
    assert err < 0.25, f"bf16 path max abs err {err}"

    # --- case 3: small feature map (HW=16 < 128 -> transposed lane-dense path),
    #     B*C = 15 exercises lane padding ---
    B3, C3, H3, W3 = 3, 5, 4, 4
    x3 = jax.random.normal(kx2, (B3, C3, H3, W3), dtype=jnp.float32)
    style3 = jax.random.normal(ks, (B3, STYLE_DIM), dtype=jnp.float32)
    weight3 = jax.random.normal(kw, (2 * C3, STYLE_DIM), dtype=jnp.float32)
    bias3 = jnp.concatenate([jnp.ones((C3,), jnp.float32),
                             jnp.zeros((C3,), jnp.float32)])
    out3 = jax.block_until_ready(
        adaptive_instance_norm(x3, style3, weight3, bias3))
    ref3 = _reference(x3, style3, weight3, bias3)
    err = float(jnp.max(jnp.abs(out3 - ref3)))
    assert err < 1e-3, f"small-HW path max abs err {err}"

    # --- case 4: row path with B*C = 15 (not a multiple of 8) -> cdiv grid +
    #     row padding, 2 grid steps ---
    x4 = jax.random.normal(kx2, (B3, C3, 16, 16), dtype=jnp.float32)
    out4 = jax.block_until_ready(
        adaptive_instance_norm(x4, style3, weight3, bias3))
    ref4 = _reference(x4, style3, weight3, bias3)
    err = float(jnp.max(jnp.abs(out4 - ref4)))
    assert err < 1e-3, f"padded row-path max abs err {err}"

    print("KERNEL_OK")
</pallas_src>

<mosaic_0001>
module attributes {stable_mosaic.version = 11 : i64} {
  func.func @_adain_kernel(%arg0: i32, %arg1: memref<8x2xf32, #tpu.memory_space<vmem>>, %arg2: memref<8x256xf32, #tpu.memory_space<vmem>>, %arg3: memref<8x256xf32, #tpu.memory_space<vmem>>) attributes {dimension_semantics = [#tpu.dimension_semantics<parallel>], iteration_bounds = array<i64: 1>, scalar_prefetch = 0 : i64, scratch_operands = 0 : i64, tpu.core_type = #tpu.core_type<tc>, window_params = [{transform_indices = @transform_0, window_bounds = array<i64: 8, 2>}, {transform_indices = @transform_1, window_bounds = array<i64: 8, 256>}, {transform_indices = @transform_2, window_bounds = array<i64: 8, 256>}]} {
    %c0 = arith.constant 0 : index
    %c0_0 = arith.constant 0 : index
    %0 = vector.load %arg2[%c0, %c0_0] : memref<8x256xf32, #tpu.memory_space<vmem>>, vector<8x256xf32>
    %cst = arith.constant dense<0.000000e+00> : vector<8xf32>
    %1 = vector.multi_reduction <add>, %0, %cst [1] : vector<8x256xf32> to vector<8xf32>
    %2 = vector.shape_cast %1 : vector<8xf32> to vector<8x1xf32>
    %cst_1 = arith.constant 3.906250e-03 : f32
    %3 = vector.broadcast %cst_1 : f32 to vector<8x1xf32>
    %4 = arith.mulf %2, %3 : vector<8x1xf32>
    %5 = arith.mulf %0, %0 : vector<8x256xf32>
    %cst_2 = arith.constant dense<0.000000e+00> : vector<8xf32>
    %6 = vector.multi_reduction <add>, %5, %cst_2 [1] : vector<8x256xf32> to vector<8xf32>
    %7 = vector.shape_cast %6 : vector<8xf32> to vector<8x1xf32>
    %cst_3 = arith.constant 3.906250e-03 : f32
    %8 = vector.broadcast %cst_3 : f32 to vector<8x1xf32>
    %9 = arith.mulf %7, %8 : vector<8x1xf32>
    %10 = arith.mulf %4, %4 : vector<8x1xf32>
    %11 = arith.subf %9, %10 : vector<8x1xf32>
    %cst_4 = arith.constant 0.000000e+00 : f32
    %12 = vector.broadcast %cst_4 : f32 to vector<8x1xf32>
    %13 = arith.maximumf %11, %12 : vector<8x1xf32>
    %c0_5 = arith.constant 0 : index
    %c0_6 = arith.constant 0 : index
    %14 = vector.load %arg1[%c0_5, %c0_6] : memref<8x2xf32, #tpu.memory_space<vmem>>, vector<8x1xf32>
    %c0_7 = arith.constant 0 : index
    %c1 = arith.constant 1 : index
    %15 = vector.load %arg1[%c0_7, %c1] : memref<8x2xf32, #tpu.memory_space<vmem>>, vector<8x1xf32>
    %cst_8 = arith.constant 9.99999974E-6 : f32
    %16 = vector.broadcast %cst_8 : f32 to vector<8x1xf32>
    %17 = arith.addf %13, %16 : vector<8x1xf32>
    %18 = math.rsqrt %17 : vector<8x1xf32>
    %19 = arith.mulf %14, %18 : vector<8x1xf32>
    %20 = arith.mulf %4, %19 : vector<8x1xf32>
    %21 = arith.subf %15, %20 : vector<8x1xf32>
    %c0_9 = arith.constant 0 : index
    %c0_10 = arith.constant 0 : index
    %22 = vector.load %arg2[%c0_9, %c0_10] : memref<8x256xf32, #tpu.memory_space<vmem>>, vector<8x256xf32>
    %23 = vector.broadcast %19 : vector<8x1xf32> to vector<8x256xf32>
    %24 = arith.mulf %22, %23 : vector<8x256xf32>
    %25 = vector.broadcast %21 : vector<8x1xf32> to vector<8x256xf32>
    %26 = arith.addf %24, %25 : vector<8x256xf32>
    %c0_11 = arith.constant 0 : index
    %c0_12 = arith.constant 0 : index
    %27 = vector.load %arg3[%c0_11, %c0_12] : memref<8x256xf32, #tpu.memory_space<vmem>>, vector<8x256xf32>
    tpu.vector_store %arg3[%c0_11, %c0_12], %26 {strides = array<i32>} : memref<8x256xf32, #tpu.memory_space<vmem>>, vector<8x256xf32>,
    return
  }
  func.func @transform_0(%arg0: i32) -> (i32, i32) {
    %c0_i32 = arith.constant 0 : i32
    %c0_i32_0 = arith.constant 0 : i32
    return %arg0, %c0_i32 : i32, i32
  }
  func.func @transform_1(%arg0: i32) -> (i32, i32) {
    %c0_i32 = arith.constant 0 : i32
    %c0_i32_0 = arith.constant 0 : i32
    return %arg0, %c0_i32 : i32, i32
  }
  func.func @transform_2(%arg0: i32) -> (i32, i32) {
    %c0_i32 = arith.constant 0 : i32
    %c0_i32_0 = arith.constant 0 : i32
    return %arg0, %c0_i32 : i32, i32
  }
}

</mosaic_0001>

<llo_original>
// kernel: tpu_custom_call.1
$region0: #{tpu_custom_call.1}
  #allocation0 [shape = 'u32[]', space=smem, size = 0x4, offset = 0x4, fixed_abs, tag = 'smem constant byte address 0x4 - core index']
  #allocation1 [shape = 'u32[72,128]{1,0:T(1,128)}', space=vmem, size = 0x9000, scoped, tag = 'internal scratch']
  %s0 = inlined_call_operand.vmem [shape: f32[8,2], index: 0, kind: input, shape index: {}]
  %s1 = inlined_call_operand.hbm [shape: f32[8,256], index: 1, kind: input, shape index: {}]
  %s2 = inlined_call_operand.hbm [shape: f32[8,256], index: 2, kind: output, shape index: {}]
  %s3 = sld [smem:[#allocation0]]
  $region22: #{tpu_custom_call.1} parent=0
    _
  %s5 = ssub.s32 1, %s3
  %s6 = scalar_select 0, %s5, %s3
  $region1: #{tpu_custom_call.1} parent=0
    #allocation2 [shape = 'u8[8192]{0}', space=vmem, size = 0x2000, scoped, tag = 'input window, operand 1, single buffered']
    #allocation3 [shape = 's32[1]{0}', space=sflag, size = 0x4, scoped, tag = 'scoped memory for tpu_custom_call.1']
    #allocation4 [shape = 's32[1]{0}', space=sflag, size = 0x4, scoped, tag = 'scoped memory for tpu_custom_call.1']
    #allocation5 [shape = 'u8[8192]{0}', space=vmem, size = 0x2000, scoped, tag = 'output window, operand 0, single buffered']
    %7 = vsyncpa [#allocation3], 0
    %8 = vsyncpa [#allocation4], 0
    // Predicated region
    $region2: #{tpu_custom_call.1} parent=1 // pred_check
      _
    $region3: #{tpu_custom_call.1} parent=1 // pred_check_branch
      %10 = sbr.rel (0) target = $region5
    $region4: #{tpu_custom_call.1} parent=1 // pred_region
      _
    $region5: #{tpu_custom_call.1} parent=1 // pred_fallthru
      _
    // Predicated region
    $region6: #{tpu_custom_call.1} parent=1 // pred_check
      _
    $region7: #{tpu_custom_call.1} parent=1 // pred_check_branch
      %12 = sbr.rel (0) target = $region9
    $region8: #{tpu_custom_call.1} parent=1 // pred_region
      %14 = vsyncadd [#allocation3], 0
      %s16 = sshll.u32 %s1, 4
      %s17 = int_to_ptr.hbm [resolvable:$true] %s16
      %s18 = sshll.u32 [#allocation2], 4
      %s19 = int_to_ptr.vmem [resolvable:$true] %s18
      %21 = dma.hbm_to_vmem [thread:$0]  %s17, 256, %s19, [#allocation3]
    $region9: #{tpu_custom_call.1} parent=1 // pred_fallthru
      _
    // Predicated region
    $region10: #{tpu_custom_call.1} parent=1 // pred_check
      _
    $region11: #{tpu_custom_call.1} parent=1 // pred_check_branch
      %23 = sbr.rel (0) target = $region13
    $region12: #{tpu_custom_call.1} parent=1 // pred_region
      %25 = dma.done [#allocation3], 256
    $region13: #{tpu_custom_call.1} parent=1 // pred_fallthru
      _
    %v26 = vld [vmem:[#allocation2] sm:$0xff]
    %v27 = vld [vmem:[#allocation2 + $0x8] sm:$0xff]
    %v28 = vadd.f32 %v26, %v27
    %29 = vadd.xlane.f32.xlu0 %v28
    %v30 = vpop.xlane.xlu0 %29
    %v31 = vmul.f32 %v30, 0.00390625
    %v32 = vmul.f32 %v26, %v26
    %v33 = vmul.f32 %v27, %v27
    %v34 = vadd.f32 %v32, %v33
    %35 = vadd.xlane.f32.xlu0 %v34
    %v36 = vpop.xlane.xlu0 %35
    %v37 = vmul.f32 %v36, 0.00390625
    %v38 = vmul.f32 %v31, %v31
    %v39 = vsub.f32 %v37, %v38
    %v40 = vmax.f32 %v39, 0.0
    %v41 = vld [vmem:[%s0] sm:$0xff]
    %v42 = vadd.f32 %v40, 1e-05
    %v43 = vrsqrt.pop %v42
    %v44 = vmul.f32 %v43, %v42
    %v45 = vmul.f32 %v44, %v43
    %v46 = vmul.f32 0.5, %v45
    %v47 = vsub.f32 1.5, %v46
    %v48 = vmul.f32 %v43, %v47
    %vm49 = vweird.f32 %v42
    %vm50 = vweird.f32 %v43
    %vm51 = vmor %vm49, %vm50
    %v52 = vsel %vm51, %v43, %v48
    %v53 = vmul.f32 %v41, %v52
    %v54 = vmul.f32 %v31, %v53
    %56 = vrot.lane.b32.xlu0 %v54, 1
    %v57 = vpop.permute.xlu0 %56
    %v59 = vsub.f32 %v41, %v57
    %61 = vset.pattern.permute.xlu0 0
    %62 = vperm.xlu0 %61, %v53
    %v63 = vpop.permute.xlu0 %62
    %v65 = vmul.f32 %v26, %v63
    %v66 = vmul.f32 %v27, %v63
    %68 = vset.pattern.permute.xlu0 1
    %69 = vperm.xlu0 %68, %v59
    %v70 = vpop.permute.xlu0 %69
    %v72 = vadd.f32 %v65, %v70
    %v73 = vadd.f32 %v66, %v70
    %74 = vst [vmem:[#allocation5] sm:$0xff] %v72
    %75 = vst [vmem:[#allocation5 + $0x8] sm:$0xff] %v73
    // Predicated region
    $region14: #{tpu_custom_call.1} parent=1 // pred_check
      _
    $region15: #{tpu_custom_call.1} parent=1 // pred_check_branch
      %77 = sbr.rel (0) target = $region17
    $region16: #{tpu_custom_call.1} parent=1 // pred_region
      %79 = vsyncadd [#allocation4], 0
      %s81 = sshll.u32 [#allocation5], 4
      %s82 = int_to_ptr.vmem [resolvable:$true] %s81
      %s83 = sshll.u32 %s2, 4
      %s84 = int_to_ptr.hbm [resolvable:$true] %s83
      %86 = dma.vmem_to_hbm [thread:$0]  %s82, 256, %s84, [#allocation4]
    $region17: #{tpu_custom_call.1} parent=1 // pred_fallthru
      _
    // Predicated region
    $region18: #{tpu_custom_call.1} parent=1 // pred_check
      _
    $region19: #{tpu_custom_call.1} parent=1 // pred_check_branch
      %88 = sbr.rel (0) target = $region21
    $region20: #{tpu_custom_call.1} parent=1 // pred_region
      %90 = dma.done [#allocation4], 256
    $region21: #{tpu_custom_call.1} parent=1 // pred_fallthru
      _
    %91 = vsyncpa [#allocation3], 1
    %92 = vsyncpa [#allocation4], 1

</llo_original>
